<compile_context>
chip_gen: v5e
topology: v5e:2x2
jax: 0.10.0
libtpu: 0.0.40
codegen_flags: <defaults>
</compile_context>

<pallas_src>
import functools

import jax
import jax.numpy as jnp
from jax import lax
from jax.experimental import pallas as pl
from jax.experimental.pallas import tpu as pltpu


# ----------------------------------------------------------------------------
# Fused kernel: one image (channel-major, flattened padded spatial) per step.
# ----------------------------------------------------------------------------
def _fused_mbv2_kernel(x_ref, mask_ref, w1_ref, b1_ref, wdw_ref, b2_ref,
                       w3_ref, b3_ref, o_ref, *, wp, q, res):
    # x_ref    : (1, Cin, Sp)   padded NCHW image, spatial flattened on lanes
    # mask_ref : (1, Sp)        1.0 inside the original image, 0.0 in the pad ring
    # w1_ref   : (hid, Cin)     expand weights with BN1 scale folded in
    # b1_ref   : (hid, 1)       BN1 bias
    # wdw_ref  : (9, hid, 1)    depthwise 3x3 weights (k = dh*3+dw), BN2 scale folded
    # b2_ref   : (hid, 1)       BN2 bias
    # w3_ref   : (Cout, hid)    project weights with BN3 scale folded in
    # b3_ref   : (Cout, 1)      BN3 bias
    # o_ref    : (1, Cout, Q)   Q = H * Wp (stride-1 output rows, padded width)
    xc = x_ref[0].astype(jnp.float32)                           # (Cin, Sp)

    # ---- 1x1 expand conv + BN + ReLU6 (MXU, channel-major) ----
    h1 = jnp.dot(w1_ref[...], xc, preferred_element_type=jnp.float32)   # (hid, Sp)
    h1 = jnp.clip(h1 + b1_ref[...], 0.0, 6.0)
    h1 = h1 * mask_ref[...]        # zero the spatial halo (conv zero-padding of h1)

    # ---- 3x3 depthwise conv (stride-1) via 9 static lane shifts, unrolled ----
    acc = None
    k = 0
    for dh in range(3):
        for dw in range(3):
            off = dh * wp + dw
            term = h1[:, off:off + q] * wdw_ref[k]               # (hid, Q)
            acc = term if acc is None else acc + term
            k += 1
    h2 = jnp.clip(acc + b2_ref[...], 0.0, 6.0)                   # (hid, Q)

    # ---- 1x1 project conv + BN (+ residual) ----
    h3 = jnp.dot(w3_ref[...], h2, preferred_element_type=jnp.float32)   # (Cout, Q)
    h3 = h3 + b3_ref[...]
    if res:
        # residual = original (unpadded) input pixels: a contiguous lane slice
        # of the padded channel-major image.
        h3 = h3 + xc[:, wp + 1: wp + 1 + q]

    o_ref[0] = h3.astype(o_ref.dtype)


# ----------------------------------------------------------------------------
# Parameter init (PyTorch-shaped conv weights + folded BN)
# ----------------------------------------------------------------------------
def init_params(key, in_channel, out_channel, ratio):
    hid = in_channel * ratio
    ks = jax.random.split(key, 15)
    eps = 1e-5

    def bn_fold(kg, kb, km, kv, c):
        gamma = jax.random.uniform(kg, (c,), minval=0.5, maxval=1.5)
        beta = jax.random.normal(kb, (c,)) * 0.1
        mean = jax.random.normal(km, (c,)) * 0.1
        var = jax.random.uniform(kv, (c,), minval=0.5, maxval=1.5)
        scale = gamma / jnp.sqrt(var + eps)
        return scale, beta - mean * scale

    w1_oihw = jax.random.normal(ks[0], (hid, in_channel, 1, 1)) * 0.1
    wd_oihw = jax.random.normal(ks[1], (hid, 1, 3, 3)) * 0.1
    w3_oihw = jax.random.normal(ks[2], (out_channel, hid, 1, 1)) * 0.1

    s1, b1 = bn_fold(ks[3], ks[4], ks[5], ks[6], hid)
    s2, b2 = bn_fold(ks[7], ks[8], ks[9], ks[10], hid)
    s3, b3 = bn_fold(ks[11], ks[12], ks[13], ks[14], out_channel)

    return dict(w1_oihw=w1_oihw, wd_oihw=wd_oihw, w3_oihw=w3_oihw,
                s1=s1, b1=b1, s2=s2, b2=b2, s3=s3, b3=b3)


# ----------------------------------------------------------------------------
# Forward pass (wrapper): pad, build mask, single fused pallas_call, subsample.
# ----------------------------------------------------------------------------
def base_mobile_resnet_forward(x_nchw, params, *, in_channel, out_channel,
                               stride, ratio=1):
    res = (stride == 1) and (in_channel == out_channel)
    hid = in_channel * ratio

    n, c, h, w = x_nchw.shape
    assert c == in_channel
    wp = w + 2                      # padded width
    sp = (h + 3) * wp               # padded rows: 1 top + 2 bottom (shift headroom)
    q = h * wp                      # stride-1 output rows carried (garbage cols kept)

    # --- prepare lane-dense, channel-major input + halo mask (cheap XLA) ---
    xp = jnp.pad(x_nchw.astype(jnp.float32), ((0, 0), (0, 0), (1, 2), (1, 1)))
    x_flat = xp.reshape(n, c, sp)                               # free reshape
    ridx = jnp.arange(sp, dtype=jnp.int32) // wp
    cidx = jnp.arange(sp, dtype=jnp.int32) % wp
    mask = (((ridx >= 1) & (ridx <= h) & (cidx >= 1) & (cidx <= w))
            .astype(jnp.float32).reshape(1, sp))

    # --- fold BN scales into conv weights; reshape to channel-major operands ---
    w1t = params["w1_oihw"][:, :, 0, 0]                         # (hid, Cin)
    w3t = params["w3_oihw"][:, :, 0, 0]                         # (Cout, hid)
    wdw = jnp.transpose(params["wd_oihw"][:, 0], (1, 2, 0)).reshape(9, hid)
    w1f = (w1t * params["s1"][:, None]).astype(jnp.float32)
    wdwf = (wdw * params["s2"][None, :]).astype(jnp.float32)[:, :, None]  # (9,hid,1)
    w3f = (w3t * params["s3"][:, None]).astype(jnp.float32)
    b1 = params["b1"].reshape(hid, 1).astype(jnp.float32)
    b2 = params["b2"].reshape(hid, 1).astype(jnp.float32)
    b3 = params["b3"].reshape(out_channel, 1).astype(jnp.float32)

    kernel = functools.partial(_fused_mbv2_kernel, wp=wp, q=q, res=res)

    out_dense = pl.pallas_call(
        kernel,
        out_shape=jax.ShapeDtypeStruct((n, out_channel, q), jnp.float32),
        grid=(n,),
        in_specs=[
            pl.BlockSpec((1, c, sp), lambda i: (i, 0, 0)),
            pl.BlockSpec((1, sp), lambda i: (0, 0)),
            pl.BlockSpec((hid, c), lambda i: (0, 0)),
            pl.BlockSpec((hid, 1), lambda i: (0, 0)),
            pl.BlockSpec((9, hid, 1), lambda i: (0, 0, 0)),
            pl.BlockSpec((hid, 1), lambda i: (0, 0)),
            pl.BlockSpec((out_channel, hid), lambda i: (0, 0)),
            pl.BlockSpec((out_channel, 1), lambda i: (0, 0)),
        ],
        out_specs=pl.BlockSpec((1, out_channel, q), lambda i: (i, 0, 0)),
        compiler_params=pltpu.CompilerParams(dimension_semantics=("parallel",)),
    )(x_flat, mask, w1f, b1, wdwf, b2, w3f, b3)

    # kernel output is already NCHW-major: (N, Cout, H, Wp) after a free reshape
    dense = out_dense.reshape(n, out_channel, h, wp)
    ho = (h - 1) // stride + 1
    wo = (w - 1) // stride + 1
    return dense[:, :, :stride * (ho - 1) + 1:stride,
                 :stride * (wo - 1) + 1:stride]


# ----------------------------------------------------------------------------
# Pure-JAX reference (lax convs) for verification
# ----------------------------------------------------------------------------
def reference_forward(x_nchw, params, *, in_channel, out_channel, stride, ratio=1):
    res = (stride == 1) and (in_channel == out_channel)
    hid = in_channel * ratio
    dn = ("NHWC", "HWIO", "NHWC")
    x = jnp.transpose(x_nchw, (0, 2, 3, 1)).astype(jnp.float32)

    w1 = jnp.transpose(params["w1_oihw"], (2, 3, 1, 0))   # (1,1,Cin,Hid)
    wd = jnp.transpose(params["wd_oihw"], (2, 3, 1, 0))   # (3,3,1,Hid)
    w3 = jnp.transpose(params["w3_oihw"], (2, 3, 1, 0))   # (1,1,Hid,Cout)

    y = lax.conv_general_dilated(x, w1, (1, 1), "VALID", dimension_numbers=dn)
    y = jnp.clip(y * params["s1"] + params["b1"], 0.0, 6.0)
    y = lax.conv_general_dilated(y, wd, (stride, stride), ((1, 1), (1, 1)),
                                 dimension_numbers=dn, feature_group_count=hid)
    y = jnp.clip(y * params["s2"] + params["b2"], 0.0, 6.0)
    y = lax.conv_general_dilated(y, w3, (1, 1), "VALID", dimension_numbers=dn)
    y = y * params["s3"] + params["b3"]
    if res:
        y = x + y
    return jnp.transpose(y, (0, 3, 1, 2))  # back to NCHW


# ----------------------------------------------------------------------------
if __name__ == "__main__":
    N, H, W = 2, 16, 16
    configs = [
        dict(in_channel=8, out_channel=8, stride=1, ratio=2),    # residual path
        dict(in_channel=8, out_channel=16, stride=1, ratio=2),   # no residual
        dict(in_channel=8, out_channel=16, stride=2, ratio=3),   # strided
    ]

    key = jax.random.PRNGKey(0)
    for cfg in configs:
        key, kx, kp = jax.random.split(key, 3)
        x = jax.random.normal(kx, (N, cfg["in_channel"], H, W), dtype=jnp.float32)
        params = init_params(kp, cfg["in_channel"], cfg["out_channel"], cfg["ratio"])

        out = base_mobile_resnet_forward(x, params, **cfg)
        out = jax.block_until_ready(out)

        ref = reference_forward(x, params, **cfg)
        assert out.shape == ref.shape, (cfg, out.shape, ref.shape)
        err = float(jnp.max(jnp.abs(out - ref)))
        assert jnp.allclose(out, ref, rtol=1e-4, atol=1e-4), (cfg, err)

    print("KERNEL_OK")
</pallas_src>

<mosaic_0001>
module attributes {stable_mosaic.version = 11 : i64} {
  func.func @_fused_mbv2_kernel(%arg0: i32, %arg1: memref<1x8x342xf32, #tpu.memory_space<vmem>>, %arg2: memref<1x342xf32, #tpu.memory_space<vmem>>, %arg3: memref<16x8xf32, #tpu.memory_space<vmem>>, %arg4: memref<16x1xf32, #tpu.memory_space<vmem>>, %arg5: memref<9x16x1xf32, #tpu.memory_space<vmem>>, %arg6: memref<16x1xf32, #tpu.memory_space<vmem>>, %arg7: memref<8x16xf32, #tpu.memory_space<vmem>>, %arg8: memref<8x1xf32, #tpu.memory_space<vmem>>, %arg9: memref<1x8x288xf32, #tpu.memory_space<vmem>>) attributes {dimension_semantics = [#tpu.dimension_semantics<parallel>], iteration_bounds = array<i64: 2>, scalar_prefetch = 0 : i64, scratch_operands = 0 : i64, tpu.core_type = #tpu.core_type<tc>, window_params = [{transform_indices = @transform_0, window_bounds = array<i64: 1, 8, 342>}, {pipeline_mode = #tpu.pipeline_mode<synchronous>, transform_indices = @transform_1, window_bounds = array<i64: 1, 342>}, {pipeline_mode = #tpu.pipeline_mode<synchronous>, transform_indices = @transform_2, window_bounds = array<i64: 16, 8>}, {pipeline_mode = #tpu.pipeline_mode<synchronous>, transform_indices = @transform_3, window_bounds = array<i64: 16, 1>}, {pipeline_mode = #tpu.pipeline_mode<synchronous>, transform_indices = @transform_4, window_bounds = array<i64: 9, 16, 1>}, {pipeline_mode = #tpu.pipeline_mode<synchronous>, transform_indices = @transform_5, window_bounds = array<i64: 16, 1>}, {pipeline_mode = #tpu.pipeline_mode<synchronous>, transform_indices = @transform_6, window_bounds = array<i64: 8, 16>}, {pipeline_mode = #tpu.pipeline_mode<synchronous>, transform_indices = @transform_7, window_bounds = array<i64: 8, 1>}, {transform_indices = @transform_8, window_bounds = array<i64: 1, 8, 288>}]} {
    %c0 = arith.constant 0 : index
    %c0_0 = arith.constant 0 : index
    %c0_1 = arith.constant 0 : index
    %0 = vector.load %arg1[%c0, %c0_0, %c0_1] : memref<1x8x342xf32, #tpu.memory_space<vmem>>, vector<1x8x342xf32>
    %1 = vector.shape_cast %0 : vector<1x8x342xf32> to vector<8x342xf32>
    %c0_2 = arith.constant 0 : index
    %c0_3 = arith.constant 0 : index
    %2 = vector.load %arg3[%c0_2, %c0_3] : memref<16x8xf32, #tpu.memory_space<vmem>>, vector<16x8xf32>
    %cst = arith.constant dense<0.000000e+00> : vector<16x342xf32>
    %3 = tpu.matmul %2, %1, %cst {dimension_numbers = #tpu.dot_dimension_numbers<[1], [0], [0], [1], [0, 0, 1, 1], [], []>} : vector<16x8xf32>, vector<8x342xf32>, vector<16x342xf32> -> vector<16x342xf32>
    %c0_4 = arith.constant 0 : index
    %c0_5 = arith.constant 0 : index
    %4 = vector.load %arg4[%c0_4, %c0_5] : memref<16x1xf32, #tpu.memory_space<vmem>>, vector<16x1xf32>
    %5 = vector.broadcast %4 : vector<16x1xf32> to vector<16x342xf32>
    %6 = arith.addf %3, %5 : vector<16x342xf32>
    %cst_6 = arith.constant 0.000000e+00 : f32
    %cst_7 = arith.constant 6.000000e+00 : f32
    %7 = vector.broadcast %cst_6 : f32 to vector<16x342xf32>
    %8 = arith.maximumf %7, %6 : vector<16x342xf32>
    %9 = vector.broadcast %cst_7 : f32 to vector<16x342xf32>
    %10 = arith.minimumf %9, %8 : vector<16x342xf32>
    %c0_8 = arith.constant 0 : index
    %c0_9 = arith.constant 0 : index
    %11 = vector.load %arg2[%c0_8, %c0_9] : memref<1x342xf32, #tpu.memory_space<vmem>>, vector<1x342xf32>
    %12 = vector.broadcast %11 : vector<1x342xf32> to vector<16x342xf32>
    %13 = arith.mulf %10, %12 : vector<16x342xf32>
    %14 = vector.extract_strided_slice %13 {offsets = [0, 0], sizes = [16, 288], strides = [1, 1]} : vector<16x342xf32> to vector<16x288xf32>
    %c0_10 = arith.constant 0 : index
    %c0_11 = arith.constant 0 : index
    %c0_12 = arith.constant 0 : index
    %15 = vector.load %arg5[%c0_10, %c0_11, %c0_12] : memref<9x16x1xf32, #tpu.memory_space<vmem>>, vector<1x16x1xf32>
    %16 = vector.shape_cast %15 : vector<1x16x1xf32> to vector<16x1xf32>
    %17 = vector.broadcast %16 : vector<16x1xf32> to vector<16x288xf32>
    %18 = arith.mulf %14, %17 : vector<16x288xf32>
    %19 = vector.extract_strided_slice %13 {offsets = [0, 1], sizes = [16, 288], strides = [1, 1]} : vector<16x342xf32> to vector<16x288xf32>
    %c1 = arith.constant 1 : index
    %c0_13 = arith.constant 0 : index
    %c0_14 = arith.constant 0 : index
    %20 = vector.load %arg5[%c1, %c0_13, %c0_14] : memref<9x16x1xf32, #tpu.memory_space<vmem>>, vector<1x16x1xf32>
    %21 = vector.shape_cast %20 : vector<1x16x1xf32> to vector<16x1xf32>
    %22 = vector.broadcast %21 : vector<16x1xf32> to vector<16x288xf32>
    %23 = arith.mulf %19, %22 : vector<16x288xf32>
    %24 = arith.addf %18, %23 : vector<16x288xf32>
    %25 = vector.extract_strided_slice %13 {offsets = [0, 2], sizes = [16, 288], strides = [1, 1]} : vector<16x342xf32> to vector<16x288xf32>
    %c2 = arith.constant 2 : index
    %c0_15 = arith.constant 0 : index
    %c0_16 = arith.constant 0 : index
    %26 = vector.load %arg5[%c2, %c0_15, %c0_16] : memref<9x16x1xf32, #tpu.memory_space<vmem>>, vector<1x16x1xf32>
    %27 = vector.shape_cast %26 : vector<1x16x1xf32> to vector<16x1xf32>
    %28 = vector.broadcast %27 : vector<16x1xf32> to vector<16x288xf32>
    %29 = arith.mulf %25, %28 : vector<16x288xf32>
    %30 = arith.addf %24, %29 : vector<16x288xf32>
    %31 = vector.extract_strided_slice %13 {offsets = [0, 18], sizes = [16, 288], strides = [1, 1]} : vector<16x342xf32> to vector<16x288xf32>
    %c3 = arith.constant 3 : index
    %c0_17 = arith.constant 0 : index
    %c0_18 = arith.constant 0 : index
    %32 = vector.load %arg5[%c3, %c0_17, %c0_18] : memref<9x16x1xf32, #tpu.memory_space<vmem>>, vector<1x16x1xf32>
    %33 = vector.shape_cast %32 : vector<1x16x1xf32> to vector<16x1xf32>
    %34 = vector.broadcast %33 : vector<16x1xf32> to vector<16x288xf32>
    %35 = arith.mulf %31, %34 : vector<16x288xf32>
    %36 = arith.addf %30, %35 : vector<16x288xf32>
    %37 = vector.extract_strided_slice %13 {offsets = [0, 19], sizes = [16, 288], strides = [1, 1]} : vector<16x342xf32> to vector<16x288xf32>
    %c4 = arith.constant 4 : index
    %c0_19 = arith.constant 0 : index
    %c0_20 = arith.constant 0 : index
    %38 = vector.load %arg5[%c4, %c0_19, %c0_20] : memref<9x16x1xf32, #tpu.memory_space<vmem>>, vector<1x16x1xf32>
    %39 = vector.shape_cast %38 : vector<1x16x1xf32> to vector<16x1xf32>
    %40 = vector.broadcast %39 : vector<16x1xf32> to vector<16x288xf32>
    %41 = arith.mulf %37, %40 : vector<16x288xf32>
    %42 = arith.addf %36, %41 : vector<16x288xf32>
    %43 = vector.extract_strided_slice %13 {offsets = [0, 20], sizes = [16, 288], strides = [1, 1]} : vector<16x342xf32> to vector<16x288xf32>
    %c5 = arith.constant 5 : index
    %c0_21 = arith.constant 0 : index
    %c0_22 = arith.constant 0 : index
    %44 = vector.load %arg5[%c5, %c0_21, %c0_22] : memref<9x16x1xf32, #tpu.memory_space<vmem>>, vector<1x16x1xf32>
    %45 = vector.shape_cast %44 : vector<1x16x1xf32> to vector<16x1xf32>
    %46 = vector.broadcast %45 : vector<16x1xf32> to vector<16x288xf32>
    %47 = arith.mulf %43, %46 : vector<16x288xf32>
    %48 = arith.addf %42, %47 : vector<16x288xf32>
    %49 = vector.extract_strided_slice %13 {offsets = [0, 36], sizes = [16, 288], strides = [1, 1]} : vector<16x342xf32> to vector<16x288xf32>
    %c6 = arith.constant 6 : index
    %c0_23 = arith.constant 0 : index
    %c0_24 = arith.constant 0 : index
    %50 = vector.load %arg5[%c6, %c0_23, %c0_24] : memref<9x16x1xf32, #tpu.memory_space<vmem>>, vector<1x16x1xf32>
    %51 = vector.shape_cast %50 : vector<1x16x1xf32> to vector<16x1xf32>
    %52 = vector.broadcast %51 : vector<16x1xf32> to vector<16x288xf32>
    %53 = arith.mulf %49, %52 : vector<16x288xf32>
    %54 = arith.addf %48, %53 : vector<16x288xf32>
    %55 = vector.extract_strided_slice %13 {offsets = [0, 37], sizes = [16, 288], strides = [1, 1]} : vector<16x342xf32> to vector<16x288xf32>
    %c7 = arith.constant 7 : index
    %c0_25 = arith.constant 0 : index
    %c0_26 = arith.constant 0 : index
    %56 = vector.load %arg5[%c7, %c0_25, %c0_26] : memref<9x16x1xf32, #tpu.memory_space<vmem>>, vector<1x16x1xf32>
    %57 = vector.shape_cast %56 : vector<1x16x1xf32> to vector<16x1xf32>
    %58 = vector.broadcast %57 : vector<16x1xf32> to vector<16x288xf32>
    %59 = arith.mulf %55, %58 : vector<16x288xf32>
    %60 = arith.addf %54, %59 : vector<16x288xf32>
    %61 = vector.extract_strided_slice %13 {offsets = [0, 38], sizes = [16, 288], strides = [1, 1]} : vector<16x342xf32> to vector<16x288xf32>
    %c8 = arith.constant 8 : index
    %c0_27 = arith.constant 0 : index
    %c0_28 = arith.constant 0 : index
    %62 = vector.load %arg5[%c8, %c0_27, %c0_28] : memref<9x16x1xf32, #tpu.memory_space<vmem>>, vector<1x16x1xf32>
    %63 = vector.shape_cast %62 : vector<1x16x1xf32> to vector<16x1xf32>
    %64 = vector.broadcast %63 : vector<16x1xf32> to vector<16x288xf32>
    %65 = arith.mulf %61, %64 : vector<16x288xf32>
    %66 = arith.addf %60, %65 : vector<16x288xf32>
    %c0_29 = arith.constant 0 : index
    %c0_30 = arith.constant 0 : index
    %67 = vector.load %arg6[%c0_29, %c0_30] : memref<16x1xf32, #tpu.memory_space<vmem>>, vector<16x1xf32>
    %68 = vector.broadcast %67 : vector<16x1xf32> to vector<16x288xf32>
    %69 = arith.addf %66, %68 : vector<16x288xf32>
    %cst_31 = arith.constant 0.000000e+00 : f32
    %cst_32 = arith.constant 6.000000e+00 : f32
    %70 = vector.broadcast %cst_31 : f32 to vector<16x288xf32>
    %71 = arith.maximumf %70, %69 : vector<16x288xf32>
    %72 = vector.broadcast %cst_32 : f32 to vector<16x288xf32>
    %73 = arith.minimumf %72, %71 : vector<16x288xf32>
    %c0_33 = arith.constant 0 : index
    %c0_34 = arith.constant 0 : index
    %74 = vector.load %arg7[%c0_33, %c0_34] : memref<8x16xf32, #tpu.memory_space<vmem>>, vector<8x16xf32>
    %cst_35 = arith.constant dense<0.000000e+00> : vector<8x288xf32>
    %75 = tpu.matmul %74, %73, %cst_35 {dimension_numbers = #tpu.dot_dimension_numbers<[1], [0], [0], [1], [0, 0, 1, 1], [], []>} : vector<8x16xf32>, vector<16x288xf32>, vector<8x288xf32> -> vector<8x288xf32>
    %c0_36 = arith.constant 0 : index
    %c0_37 = arith.constant 0 : index
    %76 = vector.load %arg8[%c0_36, %c0_37] : memref<8x1xf32, #tpu.memory_space<vmem>>, vector<8x1xf32>
    %77 = vector.broadcast %76 : vector<8x1xf32> to vector<8x288xf32>
    %78 = arith.addf %75, %77 : vector<8x288xf32>
    %79 = vector.extract_strided_slice %1 {offsets = [0, 19], sizes = [8, 288], strides = [1, 1]} : vector<8x342xf32> to vector<8x288xf32>
    %80 = arith.addf %78, %79 : vector<8x288xf32>
    %c0_38 = arith.constant 0 : index
    %c0_39 = arith.constant 0 : index
    %c0_40 = arith.constant 0 : index
    %81 = vector.load %arg9[%c0_38, %c0_39, %c0_40] : memref<1x8x288xf32, #tpu.memory_space<vmem>>, vector<1x8x288xf32>
    %82 = vector.shape_cast %81 : vector<1x8x288xf32> to vector<8x288xf32>
    %83 = vector.shape_cast %80 : vector<8x288xf32> to vector<1x8x288xf32>
    tpu.vector_store %arg9[%c0_38, %c0_39, %c0_40], %83 {strides = array<i32>} : memref<1x8x288xf32, #tpu.memory_space<vmem>>, vector<1x8x288xf32>,
    return
  }
  func.func @transform_0(%arg0: i32) -> (i32, i32, i32) {
    %c0_i32 = arith.constant 0 : i32
    %c0_i32_0 = arith.constant 0 : i32
    %c0_i32_1 = arith.constant 0 : i32
    return %arg0, %c0_i32, %c0_i32_0 : i32, i32, i32
  }
  func.func @transform_1(%arg0: i32) -> (i32, i32) {
    %c0_i32 = arith.constant 0 : i32
    %c0_i32_0 = arith.constant 0 : i32
    %c0_i32_1 = arith.constant 0 : i32
    return %c0_i32, %c0_i32_0 : i32, i32
  }
  func.func @transform_2(%arg0: i32) -> (i32, i32) {
    %c0_i32 = arith.constant 0 : i32
    %c0_i32_0 = arith.constant 0 : i32
    %c0_i32_1 = arith.constant 0 : i32
    return %c0_i32, %c0_i32_0 : i32, i32
  }
  func.func @transform_3(%arg0: i32) -> (i32, i32) {
    %c0_i32 = arith.constant 0 : i32
    %c0_i32_0 = arith.constant 0 : i32
    %c0_i32_1 = arith.constant 0 : i32
    return %c0_i32, %c0_i32_0 : i32, i32
  }
  func.func @transform_4(%arg0: i32) -> (i32, i32, i32) {
    %c0_i32 = arith.constant 0 : i32
    %c0_i32_0 = arith.constant 0 : i32
    %c0_i32_1 = arith.constant 0 : i32
    %c0_i32_2 = arith.constant 0 : i32
    return %c0_i32, %c0_i32_0, %c0_i32_1 : i32, i32, i32
  }
  func.func @transform_5(%arg0: i32) -> (i32, i32) {
    %c0_i32 = arith.constant 0 : i32
    %c0_i32_0 = arith.constant 0 : i32
    %c0_i32_1 = arith.constant 0 : i32
    return %c0_i32, %c0_i32_0 : i32, i32
  }
  func.func @transform_6(%arg0: i32) -> (i32, i32) {
    %c0_i32 = arith.constant 0 : i32
    %c0_i32_0 = arith.constant 0 : i32
    %c0_i32_1 = arith.constant 0 : i32
    return %c0_i32, %c0_i32_0 : i32, i32
  }
  func.func @transform_7(%arg0: i32) -> (i32, i32) {
    %c0_i32 = arith.constant 0 : i32
    %c0_i32_0 = arith.constant 0 : i32
    %c0_i32_1 = arith.constant 0 : i32
    return %c0_i32, %c0_i32_0 : i32, i32
  }
  func.func @transform_8(%arg0: i32) -> (i32, i32, i32) {
    %c0_i32 = arith.constant 0 : i32
    %c0_i32_0 = arith.constant 0 : i32
    %c0_i32_1 = arith.constant 0 : i32
    return %arg0, %c0_i32, %c0_i32_0 : i32, i32, i32
  }
}

</mosaic_0001>

<llo_original>
// kernel: tpu_custom_call.1
$region0: #{tpu_custom_call.1}
  #allocation0 [shape = 'u32[]', space=smem, size = 0x4, offset = 0x4, fixed_abs, tag = 'smem constant byte address 0x4 - core index']
  #allocation1 [shape = 'u32[72,128]{1,0:T(1,128)}', space=vmem, size = 0x9000, scoped, tag = 'internal scratch']
  %s0 = inlined_call_operand.vmem [shape: f32[2,8,342], index: 0, kind: input, shape index: {}]
  %s1 = inlined_call_operand.vmem [shape: f32[1,342], index: 1, kind: input, shape index: {}]
  %s2 = inlined_call_operand.vmem [shape: f32[16,8], index: 2, kind: input, shape index: {}]
  %s3 = inlined_call_operand.vmem [shape: f32[16,1], index: 3, kind: input, shape index: {}]
  %s4 = inlined_call_operand.vmem [shape: f32[9,16,1], index: 4, kind: input, shape index: {}]
  %s5 = inlined_call_operand.vmem [shape: f32[16,1], index: 5, kind: input, shape index: {}]
  %s6 = inlined_call_operand.vmem [shape: f32[8,16], index: 6, kind: input, shape index: {}]
  %s7 = inlined_call_operand.vmem [shape: f32[8,1], index: 7, kind: input, shape index: {}]
  %s8 = inlined_call_operand.hbm [shape: f32[2,8,288], index: 8, kind: output, shape index: {}]
  %s9 = sld [smem:[#allocation0]]
  $region65: #{tpu_custom_call.1} parent=0
    _
  %s11 = ssub.s32 1, %s9
  %s12 = scalar_select 0, %s11, %s9
  $region1: #{tpu_custom_call.1} parent=0
    #allocation2 [shape = 'u8[24576]{0}', space=vmem, size = 0x6000, scoped, tag = 'output window, operand 0']
    #allocation3 [shape = 's32[2]{0}', space=sflag, size = 0x8, scoped, tag = 'scoped memory for tpu_custom_call.1']
    %13 = vsyncpa [#allocation3], 0
    %s14 = scalar_lea.sflag [#allocation3], 1
    %15 = vsyncpa %s14, 0
    loop: start=0, step=1, limit=4
    $region2: #{tpu_custom_call.1} parent=1 // loop_pre_header
      _
    $region3: #{tpu_custom_call.1} parent=1 // loop_header
      %s17 = sphi 0, %s21
      %p18 = scmp.ge.s32.totalorder %s17, 4
      %s27 = sphi 0, %s29
      %s30 = sphi 0, %s27
      %s31 = sphi 0, %s30
      %s47 = sphi 0, %s31
      %s51 = sphi 0, %s51
      %s53 = sphi 0, %s51
      %s54 = sphi 0, %s53
      %s68 = sphi 0, %s54
      %s72 = sphi 0, %s72
      %s74 = sphi 0, %s72
      %s75 = sphi 0, %s74
      %s89 = sphi 0, %s75
      %s93 = sphi 0, %s93
      %s95 = sphi 0, %s93
      %s96 = sphi 0, %s95
      %s110 = sphi 0, %s96
      %s114 = sphi 0, %s114
      %s116 = sphi 0, %s114
      %s117 = sphi 0, %s116
      %s131 = sphi 0, %s117
      %s135 = sphi 0, %s135
      %s137 = sphi 0, %s135
      %s138 = sphi 0, %s137
      %s152 = sphi 0, %s138
      %s156 = sphi 0, %s156
      %s158 = sphi 0, %s156
      %s159 = sphi 0, %s158
      %s173 = sphi 0, %s159
      %s177 = sphi 0, %s177
      %s179 = sphi 0, %s177
      %s180 = sphi 0, %s179
      %s194 = sphi 0, %s180
      %s200 = sphi 0, %s202
      %s203 = sphi 0, %s200
      %s204 = sphi 0, %s203
      %s220 = sphi 0, %s204
    $region4: #{tpu_custom_call.1} parent=1 // loop_header_branch
      %20 = sbr.rel (%p18) target = $region8
    $region5: #{tpu_custom_call.1} parent=1 // loop_body
      %s22 = ssub.s32 %s17, 1
      %s23 = ssub.s32 %s17, 2
      %s24 = sadd.s32 %s17, 1
      %s25 = ssub.s32 %s17, %s24
      %p26 = scmp.eq.s32.totalorder %s25, 0
      %s28 = sadd.s32 %s27, 1
      %s29 = scalar_select %p26, %s27, %s28
      %p32 = pneg %p26
      %p33 = scmp.eq.s32.totalorder %s17, 1
      %p34 = por %p32, %p33
      %p35 = scmp.ne.s32.totalorder %s27, %s30
      %p36 = scmp.eq.s32.totalorder %s17, 0
      %p37 = por %p35, %p36
      %p38 = scmp.ne.s32.totalorder %s27, %s30
      %p39 = scmp.eq.s32.totalorder %s22, 1
      %p40 = por %p38, %p39
      %p41 = scmp.ne.s32.totalorder %s30, %s31
      %p42 = scmp.eq.s32.totalorder %s22, 0
      %p43 = por %p41, %p42
      %p44 = scmp.ne.s32.totalorder %s30, %s31
      %p45 = scmp.eq.s32.totalorder %s23, 1
      %p46 = por %p44, %p45
      %p48 = scmp.ne.s32.totalorder %s31, %s47
      %p49 = scmp.eq.s32.totalorder %s23, 0
      %p50 = por %p48, %p49
      %s52 = sadd.s32 %s51, 1
      %p55 = scmp.eq.s32.totalorder %s17, 1
      %p56 = scmp.ne.s32.totalorder %s51, %s53
      %p57 = scmp.eq.s32.totalorder %s17, 0
      %p58 = por %p56, %p57
      %p59 = scmp.ne.s32.totalorder %s51, %s53
      %p60 = scmp.eq.s32.totalorder %s22, 1
      %p61 = por %p59, %p60
      %p62 = scmp.ne.s32.totalorder %s53, %s54
      %p63 = scmp.eq.s32.totalorder %s22, 0
      %p64 = por %p62, %p63
      %p65 = scmp.ne.s32.totalorder %s53, %s54
      %p66 = scmp.eq.s32.totalorder %s23, 1
      %p67 = por %p65, %p66
      %p69 = scmp.ne.s32.totalorder %s54, %s68
      %p70 = scmp.eq.s32.totalorder %s23, 0
      %p71 = por %p69, %p70
      %s73 = sadd.s32 %s72, 1
      %p76 = scmp.eq.s32.totalorder %s17, 1
      %p77 = scmp.ne.s32.totalorder %s72, %s74
      %p78 = scmp.eq.s32.totalorder %s17, 0
      %p79 = por %p77, %p78
      %p80 = scmp.ne.s32.totalorder %s72, %s74
      %p81 = scmp.eq.s32.totalorder %s22, 1
      %p82 = por %p80, %p81
      %p83 = scmp.ne.s32.totalorder %s74, %s75
      %p84 = scmp.eq.s32.totalorder %s22, 0
      %p85 = por %p83, %p84
      %p86 = scmp.ne.s32.totalorder %s74, %s75
      %p87 = scmp.eq.s32.totalorder %s23, 1
      %p88 = por %p86, %p87
      %p90 = scmp.ne.s32.totalorder %s75, %s89
      %p91 = scmp.eq.s32.totalorder %s23, 0
      %p92 = por %p90, %p91
      %s94 = sadd.s32 %s93, 1
      %p97 = scmp.eq.s32.totalorder %s17, 1
      %p98 = scmp.ne.s32.totalorder %s93, %s95
      %p99 = scmp.eq.s32.totalorder %s17, 0
      %p100 = por %p98, %p99
      %p101 = scmp.ne.s32.totalorder %s93, %s95
      %p102 = scmp.eq.s32.totalorder %s22, 1
      %p103 = por %p101, %p102
      %p104 = scmp.ne.s32.totalorder %s95, %s96
      %p105 = scmp.eq.s32.totalorder %s22, 0
      %p106 = por %p104, %p105
      %p107 = scmp.ne.s32.totalorder %s95, %s96
      %p108 = scmp.eq.s32.totalorder %s23, 1
      %p109 = por %p107, %p108
      %p111 = scmp.ne.s32.totalorder %s96, %s110
      %p112 = scmp.eq.s32.totalorder %s23, 0
      %p113 = por %p111, %p112
      %s115 = sadd.s32 %s114, 1
      %p118 = scmp.eq.s32.totalorder %s17, 1
      %p119 = scmp.ne.s32.totalorder %s114, %s116
      %p120 = scmp.eq.s32.totalorder %s17, 0
      %p121 = por %p119, %p120
      %p122 = scmp.ne.s32.totalorder %s114, %s116
      %p123 = scmp.eq.s32.totalorder %s22, 1
      %p124 = por %p122, %p123
      %p125 = scmp.ne.s32.totalorder %s116, %s117
      %p126 = scmp.eq.s32.totalorder %s22, 0
      %p127 = por %p125, %p126
      %p128 = scmp.ne.s32.totalorder %s116, %s117
      %p129 = scmp.eq.s32.totalorder %s23, 1
      %p130 = por %p128, %p129
      %p132 = scmp.ne.s32.totalorder %s117, %s131
      %p133 = scmp.eq.s32.totalorder %s23, 0
      %p134 = por %p132, %p133
      %s136 = sadd.s32 %s135, 1
      %p139 = scmp.eq.s32.totalorder %s17, 1
      %p140 = scmp.ne.s32.totalorder %s135, %s137
      %p141 = scmp.eq.s32.totalorder %s17, 0
      %p142 = por %p140, %p141
      %p143 = scmp.ne.s32.totalorder %s135, %s137
      %p144 = scmp.eq.s32.totalorder %s22, 1
      %p145 = por %p143, %p144
      %p146 = scmp.ne.s32.totalorder %s137, %s138
      %p147 = scmp.eq.s32.totalorder %s22, 0
      %p148 = por %p146, %p147
      %p149 = scmp.ne.s32.totalorder %s137, %s138
      %p150 = scmp.eq.s32.totalorder %s23, 1
      %p151 = por %p149, %p150
      %p153 = scmp.ne.s32.totalorder %s138, %s152
      %p154 = scmp.eq.s32.totalorder %s23, 0
      %p155 = por %p153, %p154
      %s157 = sadd.s32 %s156, 1
      %p160 = scmp.eq.s32.totalorder %s17, 1
      %p161 = scmp.ne.s32.totalorder %s156, %s158
      %p162 = scmp.eq.s32.totalorder %s17, 0
      %p163 = por %p161, %p162
      %p164 = scmp.ne.s32.totalorder %s156, %s158
      %p165 = scmp.eq.s32.totalorder %s22, 1
      %p166 = por %p164, %p165
      %p167 = scmp.ne.s32.totalorder %s158, %s159
      %p168 = scmp.eq.s32.totalorder %s22, 0
      %p169 = por %p167, %p168
      %p170 = scmp.ne.s32.totalorder %s158, %s159
      %p171 = scmp.eq.s32.totalorder %s23, 1
      %p172 = por %p170, %p171
      %p174 = scmp.ne.s32.totalorder %s159, %s173
      %p175 = scmp.eq.s32.totalorder %s23, 0
      %p176 = por %p174, %p175
      %s178 = sadd.s32 %s177, 1
      %p181 = scmp.eq.s32.totalorder %s17, 1
      %p182 = scmp.ne.s32.totalorder %s177, %s179
      %p183 = scmp.eq.s32.totalorder %s17, 0
      %p184 = por %p182, %p183
      %p185 = scmp.ne.s32.totalorder %s177, %s179
      %p186 = scmp.eq.s32.totalorder %s22, 1
      %p187 = por %p185, %p186
      %p188 = scmp.ne.s32.totalorder %s179, %s180
      %p189 = scmp.eq.s32.totalorder %s22, 0
      %p190 = por %p188, %p189
      %p191 = scmp.ne.s32.totalorder %s179, %s180
      %p192 = scmp.eq.s32.totalorder %s23, 1
      %p193 = por %p191, %p192
      %p195 = scmp.ne.s32.totalorder %s180, %s194
      %p196 = scmp.eq.s32.totalorder %s23, 0
      %p197 = por %p195, %p196
      %s198 = ssub.s32 %s17, %s24
      %p199 = scmp.eq.s32.totalorder %s198, 0
      %s201 = sadd.s32 %s200, 1
      %s202 = scalar_select %p199, %s200, %s201
      %p205 = pneg %p199
      %p206 = scmp.eq.s32.totalorder %s17, 1
      %p207 = por %p205, %p206
      %p208 = scmp.ne.s32.totalorder %s200, %s203
      %p209 = scmp.eq.s32.totalorder %s17, 0
      %p210 = por %p208, %p209
      %p211 = scmp.ne.s32.totalorder %s200, %s203
      %p212 = scmp.eq.s32.totalorder %s22, 1
      %p213 = por %p211, %p212
      %p214 = scmp.ne.s32.totalorder %s203, %s204
      %p215 = scmp.eq.s32.totalorder %s22, 0
      %p216 = por %p214, %p215
      %p217 = scmp.ne.s32.totalorder %s203, %s204
      %p218 = scmp.eq.s32.totalorder %s23, 1
      %p219 = por %p217, %p218
      %p221 = scmp.ne.s32.totalorder %s204, %s220
      %p222 = scmp.eq.s32.totalorder %s23, 0
      %p223 = por %p221, %p222
      %p224 = scmp.le.s32.totalorder 1, %s17
      %p225 = scmp.lt.s32.totalorder %s17, 3
      %p226 = pnand %p224, %p225
      %p227 = pneg %p226
      // Predicated region
      $region9: #{tpu_custom_call.1} parent=5 // pred_check
        _
      $region10: #{tpu_custom_call.1} parent=5 // pred_check_branch
        %229 = sbr.rel (%p226) target = $region12
      $region11: #{tpu_custom_call.1} parent=5 // pred_region
        %s230 = ssub.s32 %s17, 1
        // Predicated region
        $region13: #{tpu_custom_call.1} parent=11 // pred_check
          %p231 = pneg %p64
        $region14: #{tpu_custom_call.1} parent=11 // pred_check_branch
          %233 = sbr.rel (%p231) target = $region16
        $region15: #{tpu_custom_call.1} parent=11 // pred_region
          _
        $region16: #{tpu_custom_call.1} parent=11 // pred_fallthru
          _
        // Predicated region
        $region17: #{tpu_custom_call.1} parent=11 // pred_check
          %p234 = pneg %p85
        $region18: #{tpu_custom_call.1} parent=11 // pred_check_branch
          %236 = sbr.rel (%p234) target = $region20
        $region19: #{tpu_custom_call.1} parent=11 // pred_region
          _
        $region20: #{tpu_custom_call.1} parent=11 // pred_fallthru
          _
        // Predicated region
        $region21: #{tpu_custom_call.1} parent=11 // pred_check
          %p237 = pneg %p106
        $region22: #{tpu_custom_call.1} parent=11 // pred_check_branch
          %239 = sbr.rel (%p237) target = $region24
        $region23: #{tpu_custom_call.1} parent=11 // pred_region
          _
        $region24: #{tpu_custom_call.1} parent=11 // pred_fallthru
          _
        // Predicated region
        $region25: #{tpu_custom_call.1} parent=11 // pred_check
          %p240 = pneg %p127
        $region26: #{tpu_custom_call.1} parent=11 // pred_check_branch
          %242 = sbr.rel (%p240) target = $region28
        $region27: #{tpu_custom_call.1} parent=11 // pred_region
          _
        $region28: #{tpu_custom_call.1} parent=11 // pred_fallthru
          _
        // Predicated region
        $region29: #{tpu_custom_call.1} parent=11 // pred_check
          %p243 = pneg %p148
        $region30: #{tpu_custom_call.1} parent=11 // pred_check_branch
          %245 = sbr.rel (%p243) target = $region32
        $region31: #{tpu_custom_call.1} parent=11 // pred_region
          _
        $region32: #{tpu_custom_call.1} parent=11 // pred_fallthru
          _
        // Predicated region
        $region33: #{tpu_custom_call.1} parent=11 // pred_check
          %p246 = pneg %p169
        $region34: #{tpu_custom_call.1} parent=11 // pred_check_branch
          %248 = sbr.rel (%p246) target = $region36
        $region35: #{tpu_custom_call.1} parent=11 // pred_region
          _
        $region36: #{tpu_custom_call.1} parent=11 // pred_fallthru
          _
        // Predicated region
        $region37: #{tpu_custom_call.1} parent=11 // pred_check
          %p249 = pneg %p190
        $region38: #{tpu_custom_call.1} parent=11 // pred_check_branch
          %251 = sbr.rel (%p249) target = $region40
        $region39: #{tpu_custom_call.1} parent=11 // pred_region
          _
        $region40: #{tpu_custom_call.1} parent=11 // pred_fallthru
          _
      $region12: #{tpu_custom_call.1} parent=5 // pred_fallthru
        _
      %p252 = scmp.lt.s32.totalorder %s17, 2
      // Predicated region
      $region41: #{tpu_custom_call.1} parent=5 // pred_check
        %p253 = pneg %p252
      $region42: #{tpu_custom_call.1} parent=5 // pred_check_branch
        %255 = sbr.rel (%p253) target = $region44
      $region43: #{tpu_custom_call.1} parent=5 // pred_region
        // Predicated region
        $region45: #{tpu_custom_call.1} parent=43 // pred_check
          %p256 = pneg %p37
        $region46: #{tpu_custom_call.1} parent=43 // pred_check_branch
          %258 = sbr.rel (%p256) target = $region48
        $region47: #{tpu_custom_call.1} parent=43 // pred_region
          %p259 = scmp.lt.s32.totalorder %s17, 1
          %s260 = scalar_select %p259, %s17, 1
          %s261 = smul.addr %s260, 3
          %s262 = smul.addr %s261, 8
          %s263 = scalar_lea.vmem %s0, %s262
        $region48: #{tpu_custom_call.1} parent=43 // pred_fallthru
          _
      $region44: #{tpu_custom_call.1} parent=5 // pred_fallthru
        _
      %p264 = scmp.le.s32.totalorder 1, %s17
      %p265 = scmp.lt.s32.totalorder %s17, 3
      %p266 = pnand %p264, %p265
      %p267 = pneg %p266
      // Predicated region
      $region49: #{tpu_custom_call.1} parent=5 // pred_check
        _
      $region50: #{tpu_custom_call.1} parent=5 // pred_check_branch
        %269 = sbr.rel (%p266) target = $region52
      $region51: #{tpu_custom_call.1} parent=5 // pred_region
        %s270 = ssub.s32 %s17, 1
        %p271 = scmp.lt.s32.totalorder %s22, 1
        %s272 = scalar_select %p271, %s22, 1
        %s273 = smul.addr %s272, 3
        %s274 = smul.addr %s273, 8
        %s275 = scalar_lea.vmem %s0, %s274
        %p276 = pneg %p43
        %p277 = pneg %p40
        %p278 = pneg %p64
        %p279 = pneg %p61
        %p280 = pneg %p85
        %p281 = pneg %p82
        %p282 = pneg %p106
        %p283 = pneg %p103
        %p284 = pneg %p127
        %p285 = pneg %p124
        %p286 = pneg %p148
        %p287 = pneg %p145
        %p288 = pneg %p169
        %p289 = pneg %p166
        %p290 = pneg %p190
        %p291 = pneg %p187
        %p292 = pneg %p216
        %p293 = pneg %p213
        %s294 = sand.u32 %s203, 1
        %s295 = scalar_lea.sflag [#allocation3], %s294
        %s296 = sand.u32 %s203, 1
        %s297 = smul.addr %s296, 24
        %s298 = scalar_lea.vmem [#allocation2], %s297
        %p299 = scmp.lt.s32.totalorder %s22, 1
        %s300 = scalar_select %p299, %s22, 1
        %s301 = smul.addr %s300, 3
        %s302 = smul.addr %s301, 8
        %s303 = scalar_lea.vmem %s0, %s302
        %v304 = vld [vmem:[%s303] sm:$0xff]
        %v305 = vld [vmem:[%s303 + $0x8] sm:$0xff]
        %v306 = vld [vmem:[%s303 + $0x10] sm:$0xff]
        %v307 = vld [vmem:[%s2] sm:$0xff]
        %v308 = vld [vmem:[%s2 + $0x8] sm:$0xff]
        %v309 = vld [vmem:[%s3] sm:$0xff]
        %v310 = vld [vmem:[%s3 + $0x8] sm:$0xff]
        %312 = vset.pattern.permute.xlu0 0
        %313 = vperm.xlu0 %312, %v309
        %v314 = vpop.permute.xlu0 %313
        %317 = vset.pattern.permute.xlu0 0
        %318 = vperm.xlu0 %317, %v310
        %v319 = vpop.permute.xlu0 %318
        %vm321 = vcmask 64512
        %v323 = vsel %vm321, %v307, 0
        %v326 = vsel %vm321, %v308, 0
        %328 = vmatpush.msra.mxu0 0.0
        %329 = vmatpush.msra.mxu0 0.0
        %330 = vmatpush.msra.mxu0 0.0
        %331 = vmatpush.msra.mxu0 0.0
        %332 = vmatpush.msra.mxu0 0.0
        %333 = vmatpush.msra.mxu0 0.0
        %334 = vmatpush.msra.mxu0 0.0
        %335 = vmatpush.msra.mxu0 0.0
        %336 = vmatpush.msra.mxu0 0.0
        %337 = vmatpush.msra.mxu0 0.0
        %338 = vmatpush.msra.mxu0 0.0
        %339 = vmatpush.msra.mxu0 0.0
        %340 = vmatpush.msra.mxu0 0.0
        %341 = vmatpush.msra.mxu0 0.0
        %342 = vmatpush.msra.mxu0 0.0
        %343 = vmatpush.msra.mxu0 %v304
        %344 = vmatmul.f32.gmra.mxu0 %v323
        %v345 = vpop.f32.mrf.mxu0
        %v346 = vadd.f32 %v314, %v345
        %347 = vmatmul.f32.gmra.mxu0 %v326
        %v348 = vpop.f32.mrf.mxu0
        %v349 = vadd.f32 %v319, %v348
        %350 = vdwg.mxu0
        %351 = vmatpush.msra.mxu0 0.0
        %352 = vmatpush.msra.mxu0 0.0
        %353 = vmatpush.msra.mxu0 0.0
        %354 = vmatpush.msra.mxu0 0.0
        %355 = vmatpush.msra.mxu0 0.0
        %356 = vmatpush.msra.mxu0 0.0
        %357 = vmatpush.msra.mxu0 0.0
        %358 = vmatpush.msra.mxu0 0.0
        %359 = vmatpush.msra.mxu0 0.0
        %360 = vmatpush.msra.mxu0 0.0
        %361 = vmatpush.msra.mxu0 0.0
        %362 = vmatpush.msra.mxu0 0.0
        %363 = vmatpush.msra.mxu0 0.0
        %364 = vmatpush.msra.mxu0 0.0
        %365 = vmatpush.msra.mxu0 0.0
        %366 = vmatpush.msra.mxu0 %v305
        %367 = vmatmul.f32.gmra.mxu0 %v323
        %v368 = vpop.f32.mrf.mxu0
        %v369 = vadd.f32 %v314, %v368
        %370 = vmatmul.f32.gmra.mxu0 %v326
        %v371 = vpop.f32.mrf.mxu0
        %v372 = vadd.f32 %v319, %v371
        %373 = vdwg.mxu0
        %374 = vmatpush.msra.mxu0 0.0
        %375 = vmatpush.msra.mxu0 0.0
        %376 = vmatpush.msra.mxu0 0.0
        %377 = vmatpush.msra.mxu0 0.0
        %378 = vmatpush.msra.mxu0 0.0
        %379 = vmatpush.msra.mxu0 0.0
        %380 = vmatpush.msra.mxu0 0.0
        %381 = vmatpush.msra.mxu0 0.0
        %382 = vmatpush.msra.mxu0 0.0
        %383 = vmatpush.msra.mxu0 0.0
        %384 = vmatpush.msra.mxu0 0.0
        %385 = vmatpush.msra.mxu0 0.0
        %386 = vmatpush.msra.mxu0 0.0
        %387 = vmatpush.msra.mxu0 0.0
        %388 = vmatpush.msra.mxu0 0.0
        %389 = vmatpush.msra.mxu0 %v306
        %390 = vmatmul.f32.gmra.mxu0 %v323
        %v391 = vpop.f32.mrf.mxu0
        %v392 = vadd.f32 %v314, %v391
        %393 = vmatmul.f32.gmra.mxu0 %v326
        %v394 = vpop.f32.mrf.mxu0
        %v395 = vadd.f32 %v319, %v394
        %396 = vdwg.mxu0
        %v397 = vmax.f32 %v346, 0.0
        %v398 = vmax.f32 %v369, 0.0
        %v399 = vmax.f32 %v392, 0.0
        %v400 = vmax.f32 %v349, 0.0
        %v401 = vmax.f32 %v372, 0.0
        %v402 = vmax.f32 %v395, 0.0
        %v403 = vmin.f32 %v397, 6.0
        %v404 = vmin.f32 %v398, 6.0
        %v405 = vmin.f32 %v399, 6.0
        %v406 = vmin.f32 %v400, 6.0
        %v407 = vmin.f32 %v401, 6.0
        %v408 = vmin.f32 %v402, 6.0
        %v409 = vld [vmem:[%s1] sm:$0x7]
        %v411 = vperm.slane %v409, 0
        %v412 = vperm.slane %v409, 1
        %v413 = vperm.slane %v409, 2
        %v417 = vmul.f32 %v403, %v411
        %v418 = vmul.f32 %v404, %v412
        %v419 = vmul.f32 %v405, %v413
        %v420 = vmul.f32 %v406, %v411
        %v421 = vmul.f32 %v407, %v412
        %v422 = vmul.f32 %v408, %v413
        %v423 = vld [vmem:[%s4] sm:$0xff]
        %v424 = vld [vmem:[%s4 + $0x8] sm:$0xff]
        %426 = vset.pattern.permute.xlu0 0
        %427 = vperm.xlu0 %426, %v423
        %v428 = vpop.permute.xlu0 %427
        %431 = vset.pattern.permute.xlu0 0
        %432 = vperm.xlu0 %431, %v424
        %v433 = vpop.permute.xlu0 %432
        %v435 = vmul.f32 %v417, %v428
        %v436 = vmul.f32 %v418, %v428
        %v437 = vmul.f32 %v419, %v428
        %v438 = vmul.f32 %v420, %v433
        %v439 = vmul.f32 %v421, %v433
        %v440 = vmul.f32 %v422, %v433
        %s441 = scalar_lea.vmem %s4, 16
        %v442 = vld [vmem:[%s441] sm:$0xff]
        %v443 = vld [vmem:[%s441 + $0x8] sm:$0xff]
        %445 = vset.pattern.permute.xlu0 0
        %446 = vperm.xlu0 %445, %v442
        %v447 = vpop.permute.xlu0 %446
        %450 = vset.pattern.permute.xlu0 0
        %451 = vperm.xlu0 %450, %v443
        %v452 = vpop.permute.xlu0 %451
        %v454 = vmul.f32 %v417, %v447
        %v455 = vmul.f32 %v418, %v447
        %v456 = vmul.f32 %v419, %v447
        %v457 = vmul.f32 %v420, %v452
        %v458 = vmul.f32 %v421, %v452
        %v459 = vmul.f32 %v422, %v452
        %466 = vrot.lane.b32.xlu0 %v454, 127
        %v467 = vpop.permute.xlu0 %466
        %468 = vrot.lane.b32.xlu0 %v455, 127
        %v469 = vpop.permute.xlu0 %468
        %470 = vrot.lane.b32.xlu0 %v456, 127
        %v471 = vpop.permute.xlu0 %470
        %472 = vrot.lane.b32.xlu0 %v457, 127
        %v473 = vpop.permute.xlu0 %472
        %474 = vrot.lane.b32.xlu0 %v458, 127
        %v475 = vpop.permute.xlu0 %474
        %476 = vrot.lane.b32.xlu0 %v459, 127
        %v477 = vpop.permute.xlu0 %476
        %vm478 = vcmask 1039360
        %v479 = vsel %vm478, %v467, %v469
        %v480 = vsel %vm478, %v469, %v471
        %v481 = vsel %vm478, %v473, %v475
        %v482 = vsel %vm478, %v475, %v477
        %v489 = vadd.f32 %v435, %v479
        %v490 = vadd.f32 %v436, %v480
        %v491 = vadd.f32 %v437, %v471
        %v492 = vadd.f32 %v438, %v481
        %v493 = vadd.f32 %v439, %v482
        %v494 = vadd.f32 %v440, %v477
        %s495 = scalar_lea.vmem %s4, 32
        %v496 = vld [vmem:[%s495] sm:$0xff]
        %v497 = vld [vmem:[%s495 + $0x8] sm:$0xff]
        %499 = vset.pattern.permute.xlu0 0
        %500 = vperm.xlu0 %499, %v496
        %v501 = vpop.permute.xlu0 %500
        %504 = vset.pattern.permute.xlu0 0
        %505 = vperm.xlu0 %504, %v497
        %v506 = vpop.permute.xlu0 %505
        %v508 = vmul.f32 %v417, %v501
        %v509 = vmul.f32 %v418, %v501
        %v510 = vmul.f32 %v419, %v501
        %v511 = vmul.f32 %v420, %v506
        %v512 = vmul.f32 %v421, %v506
        %v513 = vmul.f32 %v422, %v506
        %520 = vrot.lane.b32.xlu0 %v508, 126
        %v521 = vpop.permute.xlu0 %520
        %522 = vrot.lane.b32.xlu0 %v509, 126
        %v523 = vpop.permute.xlu0 %522
        %524 = vrot.lane.b32.xlu0 %v510, 126
        %v525 = vpop.permute.xlu0 %524
        %526 = vrot.lane.b32.xlu0 %v511, 126
        %v527 = vpop.permute.xlu0 %526
        %528 = vrot.lane.b32.xlu0 %v512, 126
        %v529 = vpop.permute.xlu0 %528
        %530 = vrot.lane.b32.xlu0 %v513, 126
        %v531 = vpop.permute.xlu0 %530
        %vm532 = vcmask 1031168
        %v533 = vsel %vm532, %v521, %v523
        %v534 = vsel %vm532, %v523, %v525
        %v535 = vsel %vm532, %v527, %v529
        %v536 = vsel %vm532, %v529, %v531
        %v543 = vadd.f32 %v489, %v533
        %v544 = vadd.f32 %v490, %v534
        %v545 = vadd.f32 %v491, %v525
        %v546 = vadd.f32 %v492, %v535
        %v547 = vadd.f32 %v493, %v536
        %v548 = vadd.f32 %v494, %v531
        %s549 = scalar_lea.vmem %s4, 48
        %v550 = vld [vmem:[%s549] sm:$0xff]
        %v551 = vld [vmem:[%s549 + $0x8] sm:$0xff]
        %553 = vset.pattern.permute.xlu0 0
        %554 = vperm.xlu0 %553, %v550
        %v555 = vpop.permute.xlu0 %554
        %558 = vset.pattern.permute.xlu0 0
        %559 = vperm.xlu0 %558, %v551
        %v560 = vpop.permute.xlu0 %559
        %v562 = vmul.f32 %v417, %v555
        %v563 = vmul.f32 %v418, %v555
        %v564 = vmul.f32 %v419, %v555
        %v565 = vmul.f32 %v420, %v560
        %v566 = vmul.f32 %v421, %v560
        %v567 = vmul.f32 %v422, %v560
        %574 = vrot.lane.b32.xlu0 %v562, 110
        %v575 = vpop.permute.xlu0 %574
        %576 = vrot.lane.b32.xlu0 %v563, 110
        %v577 = vpop.permute.xlu0 %576
        %578 = vrot.lane.b32.xlu0 %v564, 110
        %v579 = vpop.permute.xlu0 %578
        %580 = vrot.lane.b32.xlu0 %v565, 110
        %v581 = vpop.permute.xlu0 %580
        %582 = vrot.lane.b32.xlu0 %v566, 110
        %v583 = vpop.permute.xlu0 %582
        %584 = vrot.lane.b32.xlu0 %v567, 110
        %v585 = vpop.permute.xlu0 %584
        %vm586 = vcmask 900096
        %v587 = vsel %vm586, %v575, %v577
        %v588 = vsel %vm586, %v577, %v579
        %v589 = vsel %vm586, %v581, %v583
        %v590 = vsel %vm586, %v583, %v585
        %v597 = vadd.f32 %v543, %v587
        %v598 = vadd.f32 %v544, %v588
        %v599 = vadd.f32 %v545, %v579
        %v600 = vadd.f32 %v546, %v589
        %v601 = vadd.f32 %v547, %v590
        %v602 = vadd.f32 %v548, %v585
        %s603 = scalar_lea.vmem %s4, 64
        %v604 = vld [vmem:[%s603] sm:$0xff]
        %v605 = vld [vmem:[%s603 + $0x8] sm:$0xff]
        %607 = vset.pattern.permute.xlu0 0
        %608 = vperm.xlu0 %607, %v604
        %v609 = vpop.permute.xlu0 %608
        %612 = vset.pattern.permute.xlu0 0
        %613 = vperm.xlu0 %612, %v605
        %v614 = vpop.permute.xlu0 %613
        %v616 = vmul.f32 %v417, %v609
        %v617 = vmul.f32 %v418, %v609
        %v618 = vmul.f32 %v419, %v609
        %v619 = vmul.f32 %v420, %v614
        %v620 = vmul.f32 %v421, %v614
        %v621 = vmul.f32 %v422, %v614
        %628 = vrot.lane.b32.xlu0 %v616, 109
        %v629 = vpop.permute.xlu0 %628
        %630 = vrot.lane.b32.xlu0 %v617, 109
        %v631 = vpop.permute.xlu0 %630
        %632 = vrot.lane.b32.xlu0 %v618, 109
        %v633 = vpop.permute.xlu0 %632
        %634 = vrot.lane.b32.xlu0 %v619, 109
        %v635 = vpop.permute.xlu0 %634
        %636 = vrot.lane.b32.xlu0 %v620, 109
        %v637 = vpop.permute.xlu0 %636
        %638 = vrot.lane.b32.xlu0 %v621, 109
        %v639 = vpop.permute.xlu0 %638
        %vm640 = vcmask 891904
        %v641 = vsel %vm640, %v629, %v631
        %v642 = vsel %vm640, %v631, %v633
        %v643 = vsel %vm640, %v635, %v637
        %v644 = vsel %vm640, %v637, %v639
        %v651 = vadd.f32 %v597, %v641
        %v652 = vadd.f32 %v598, %v642
        %v653 = vadd.f32 %v599, %v633
        %v654 = vadd.f32 %v600, %v643
        %v655 = vadd.f32 %v601, %v644
        %v656 = vadd.f32 %v602, %v639
        %s657 = scalar_lea.vmem %s4, 80
        %v658 = vld [vmem:[%s657] sm:$0xff]
        %v659 = vld [vmem:[%s657 + $0x8] sm:$0xff]
        %661 = vset.pattern.permute.xlu0 0
        %662 = vperm.xlu0 %661, %v658
        %v663 = vpop.permute.xlu0 %662
        %666 = vset.pattern.permute.xlu0 0
        %667 = vperm.xlu0 %666, %v659
        %v668 = vpop.permute.xlu0 %667
        %v670 = vmul.f32 %v417, %v663
        %v671 = vmul.f32 %v418, %v663
        %v672 = vmul.f32 %v419, %v663
        %v673 = vmul.f32 %v420, %v668
        %v674 = vmul.f32 %v421, %v668
        %v675 = vmul.f32 %v422, %v668
        %682 = vrot.lane.b32.xlu0 %v670, 108
        %v683 = vpop.permute.xlu0 %682
        %684 = vrot.lane.b32.xlu0 %v671, 108
        %v685 = vpop.permute.xlu0 %684
        %686 = vrot.lane.b32.xlu0 %v672, 108
        %v687 = vpop.permute.xlu0 %686
        %688 = vrot.lane.b32.xlu0 %v673, 108
        %v689 = vpop.permute.xlu0 %688
        %690 = vrot.lane.b32.xlu0 %v674, 108
        %v691 = vpop.permute.xlu0 %690
        %692 = vrot.lane.b32.xlu0 %v675, 108
        %v693 = vpop.permute.xlu0 %692
        %vm694 = vcmask 883712
        %v695 = vsel %vm694, %v683, %v685
        %v696 = vsel %vm694, %v685, %v687
        %v697 = vsel %vm694, %v689, %v691
        %v698 = vsel %vm694, %v691, %v693
        %v705 = vadd.f32 %v651, %v695
        %v706 = vadd.f32 %v652, %v696
        %v707 = vadd.f32 %v653, %v687
        %v708 = vadd.f32 %v654, %v697
        %v709 = vadd.f32 %v655, %v698
        %v710 = vadd.f32 %v656, %v693
        %s711 = scalar_lea.vmem %s4, 96
        %v712 = vld [vmem:[%s711] sm:$0xff]
        %v713 = vld [vmem:[%s711 + $0x8] sm:$0xff]
        %715 = vset.pattern.permute.xlu0 0
        %716 = vperm.xlu0 %715, %v712
        %v717 = vpop.permute.xlu0 %716
        %720 = vset.pattern.permute.xlu0 0
        %721 = vperm.xlu0 %720, %v713
        %v722 = vpop.permute.xlu0 %721
        %v724 = vmul.f32 %v417, %v717
        %v725 = vmul.f32 %v418, %v717
        %v726 = vmul.f32 %v419, %v717
        %v727 = vmul.f32 %v420, %v722
        %v728 = vmul.f32 %v421, %v722
        %v729 = vmul.f32 %v422, %v722
        %736 = vrot.lane.b32.xlu0 %v724, 92
        %v737 = vpop.permute.xlu0 %736
        %738 = vrot.lane.b32.xlu0 %v725, 92
        %v739 = vpop.permute.xlu0 %738
        %740 = vrot.lane.b32.xlu0 %v726, 92
        %v741 = vpop.permute.xlu0 %740
        %742 = vrot.lane.b32.xlu0 %v727, 92
        %v743 = vpop.permute.xlu0 %742
        %744 = vrot.lane.b32.xlu0 %v728, 92
        %v745 = vpop.permute.xlu0 %744
        %746 = vrot.lane.b32.xlu0 %v729, 92
        %v747 = vpop.permute.xlu0 %746
        %vm748 = vcmask 752640
        %v749 = vsel %vm748, %v737, %v739
        %v750 = vsel %vm748, %v739, %v741
        %v751 = vsel %vm748, %v743, %v745
        %v752 = vsel %vm748, %v745, %v747
        %v759 = vadd.f32 %v705, %v749
        %v760 = vadd.f32 %v706, %v750
        %v761 = vadd.f32 %v707, %v741
        %v762 = vadd.f32 %v708, %v751
        %v763 = vadd.f32 %v709, %v752
        %v764 = vadd.f32 %v710, %v747
        %s765 = scalar_lea.vmem %s4, 112
        %v766 = vld [vmem:[%s765] sm:$0xff]
        %v767 = vld [vmem:[%s765 + $0x8] sm:$0xff]
        %769 = vset.pattern.permute.xlu0 0
        %770 = vperm.xlu0 %769, %v766
        %v771 = vpop.permute.xlu0 %770
        %774 = vset.pattern.permute.xlu0 0
        %775 = vperm.xlu0 %774, %v767
        %v776 = vpop.permute.xlu0 %775
        %v778 = vmul.f32 %v417, %v771
        %v779 = vmul.f32 %v418, %v771
        %v780 = vmul.f32 %v419, %v771
        %v781 = vmul.f32 %v420, %v776
        %v782 = vmul.f32 %v421, %v776
        %v783 = vmul.f32 %v422, %v776
        %790 = vrot.lane.b32.xlu0 %v778, 91
        %v791 = vpop.permute.xlu0 %790
        %792 = vrot.lane.b32.xlu0 %v779, 91
        %v793 = vpop.permute.xlu0 %792
        %794 = vrot.lane.b32.xlu0 %v780, 91
        %v795 = vpop.permute.xlu0 %794
        %796 = vrot.lane.b32.xlu0 %v781, 91
        %v797 = vpop.permute.xlu0 %796
        %798 = vrot.lane.b32.xlu0 %v782, 91
        %v799 = vpop.permute.xlu0 %798
        %800 = vrot.lane.b32.xlu0 %v783, 91
        %v801 = vpop.permute.xlu0 %800
        %vm802 = vcmask 744448
        %v803 = vsel %vm802, %v791, %v793
        %v804 = vsel %vm802, %v793, %v795
        %v805 = vsel %vm802, %v797, %v799
        %v806 = vsel %vm802, %v799, %v801
        %v813 = vadd.f32 %v759, %v803
        %v814 = vadd.f32 %v760, %v804
        %v815 = vadd.f32 %v761, %v795
        %v816 = vadd.f32 %v762, %v805
        %v817 = vadd.f32 %v763, %v806
        %v818 = vadd.f32 %v764, %v801
        %s819 = scalar_lea.vmem %s4, 128
        %v820 = vld [vmem:[%s819] sm:$0xff]
        %v821 = vld [vmem:[%s819 + $0x8] sm:$0xff]
        %823 = vset.pattern.permute.xlu0 0
        %824 = vperm.xlu0 %823, %v820
        %v825 = vpop.permute.xlu0 %824
        %828 = vset.pattern.permute.xlu0 0
        %829 = vperm.xlu0 %828, %v821
        %v830 = vpop.permute.xlu0 %829
        %v832 = vmul.f32 %v417, %v825
        %v833 = vmul.f32 %v418, %v825
        %v834 = vmul.f32 %v419, %v825
        %v835 = vmul.f32 %v420, %v830
        %v836 = vmul.f32 %v421, %v830
        %v837 = vmul.f32 %v422, %v830
        %844 = vrot.lane.b32.xlu0 %v832, 90
        %v845 = vpop.permute.xlu0 %844
        %846 = vrot.lane.b32.xlu0 %v833, 90
        %v847 = vpop.permute.xlu0 %846
        %848 = vrot.lane.b32.xlu0 %v834, 90
        %v849 = vpop.permute.xlu0 %848
        %850 = vrot.lane.b32.xlu0 %v835, 90
        %v851 = vpop.permute.xlu0 %850
        %852 = vrot.lane.b32.xlu0 %v836, 90
        %v853 = vpop.permute.xlu0 %852
        %854 = vrot.lane.b32.xlu0 %v837, 90
        %v855 = vpop.permute.xlu0 %854
        %vm856 = vcmask 736256
        %v857 = vsel %vm856, %v845, %v847
        %v858 = vsel %vm856, %v847, %v849
        %v859 = vsel %vm856, %v851, %v853
        %v860 = vsel %vm856, %v853, %v855
        %v867 = vadd.f32 %v813, %v857
        %v868 = vadd.f32 %v814, %v858
        %v869 = vadd.f32 %v815, %v849
        %v870 = vadd.f32 %v816, %v859
        %v871 = vadd.f32 %v817, %v860
        %v872 = vadd.f32 %v818, %v855
        %v873 = vld [vmem:[%s5] sm:$0xff]
        %v874 = vld [vmem:[%s5 + $0x8] sm:$0xff]
        %876 = vset.pattern.permute.xlu0 0
        %877 = vperm.xlu0 %876, %v873
        %v878 = vpop.permute.xlu0 %877
        %881 = vset.pattern.permute.xlu0 0
        %882 = vperm.xlu0 %881, %v874
        %v883 = vpop.permute.xlu0 %882
        %v885 = vadd.f32 %v867, %v878
        %v886 = vadd.f32 %v868, %v878
        %v887 = vadd.f32 %v869, %v878
        %v888 = vadd.f32 %v870, %v883
        %v889 = vadd.f32 %v871, %v883
        %v890 = vadd.f32 %v872, %v883
        %v891 = vmax.f32 %v885, 0.0
        %v892 = vmax.f32 %v886, 0.0
        %v893 = vmax.f32 %v887, 0.0
        %v894 = vmax.f32 %v888, 0.0
        %v895 = vmax.f32 %v889, 0.0
        %v896 = vmax.f32 %v890, 0.0
        %v897 = vmin.f32 %v891, 6.0
        %v898 = vmin.f32 %v892, 6.0
        %v899 = vmin.f32 %v893, 6.0
        %v900 = vmin.f32 %v894, 6.0
        %v901 = vmin.f32 %v895, 6.0
        %v902 = vmin.f32 %v896, 6.0
        %v903 = vld [vmem:[%s6] sm:$0xff]
        %v904 = vld [vmem:[%s7] sm:$0xff]
        %906 = vset.pattern.permute.xlu0 0
        %907 = vperm.xlu0 %906, %v904
        %v908 = vpop.permute.xlu0 %907
        %vm910 = vcmask 130048
        %v912 = vsel %vm910, %v903, 0
        %914 = vmatpush.msra.mxu0 0.0
        %915 = vmatpush.msra.mxu0 0.0
        %916 = vmatpush.msra.mxu0 0.0
        %917 = vmatpush.msra.mxu0 0.0
        %918 = vmatpush.msra.mxu0 0.0
        %919 = vmatpush.msra.mxu0 0.0
        %920 = vmatpush.msra.mxu0 0.0
        %921 = vmatpush.msra.mxu0 0.0
        %922 = vmatpush.msra.mxu0 0.0
        %923 = vmatpush.msra.mxu0 0.0
        %924 = vmatpush.msra.mxu0 0.0
        %925 = vmatpush.msra.mxu0 0.0
        %926 = vmatpush.msra.mxu0 0.0
        %927 = vmatpush.msra.mxu0 0.0
        %928 = vmatpush.msra.mxu0 %v900
        %929 = vmatpush.msra.mxu0 %v897
        %930 = vmatmul.f32.gmra.mxu0 %v912
        %v931 = vpop.f32.mrf.mxu0
        %v932 = vadd.f32 %v908, %v931
        %933 = vdwg.mxu0
        %934 = vmatpush.msra.mxu0 0.0
        %935 = vmatpush.msra.mxu0 0.0
        %936 = vmatpush.msra.mxu0 0.0
        %937 = vmatpush.msra.mxu0 0.0
        %938 = vmatpush.msra.mxu0 0.0
        %939 = vmatpush.msra.mxu0 0.0
        %940 = vmatpush.msra.mxu0 0.0
        %941 = vmatpush.msra.mxu0 0.0
        %942 = vmatpush.msra.mxu0 0.0
        %943 = vmatpush.msra.mxu0 0.0
        %944 = vmatpush.msra.mxu0 0.0
        %945 = vmatpush.msra.mxu0 0.0
        %946 = vmatpush.msra.mxu0 0.0
        %947 = vmatpush.msra.mxu0 0.0
        %948 = vmatpush.msra.mxu0 %v901
        %949 = vmatpush.msra.mxu0 %v898
        %950 = vmatmul.f32.gmra.mxu0 %v912
        %v951 = vpop.f32.mrf.mxu0
        %v952 = vadd.f32 %v908, %v951
        %953 = vdwg.mxu0
        %954 = vmatpush.msra.mxu0 0.0
        %955 = vmatpush.msra.mxu0 0.0
        %956 = vmatpush.msra.mxu0 0.0
        %957 = vmatpush.msra.mxu0 0.0
        %958 = vmatpush.msra.mxu0 0.0
        %959 = vmatpush.msra.mxu0 0.0
        %960 = vmatpush.msra.mxu0 0.0
        %961 = vmatpush.msra.mxu0 0.0
        %962 = vmatpush.msra.mxu0 0.0
        %963 = vmatpush.msra.mxu0 0.0
        %964 = vmatpush.msra.mxu0 0.0
        %965 = vmatpush.msra.mxu0 0.0
        %966 = vmatpush.msra.mxu0 0.0
        %967 = vmatpush.msra.mxu0 0.0
        %968 = vmatpush.msra.mxu0 %v902
        %969 = vmatpush.msra.mxu0 %v899
        %970 = vmatmul.f32.gmra.mxu0 %v912
        %v971 = vpop.f32.mrf.mxu0
        %v972 = vadd.f32 %v908, %v971
        %973 = vdwg.mxu0
        %977 = vrot.lane.b32.xlu0 %v304, 109
        %v978 = vpop.permute.xlu0 %977
        %979 = vrot.lane.b32.xlu0 %v305, 109
        %v980 = vpop.permute.xlu0 %979
        %981 = vrot.lane.b32.xlu0 %v306, 109
        %v982 = vpop.permute.xlu0 %981
        %v983 = vsel %vm640, %v978, %v980
        %v984 = vsel %vm640, %v980, %v982
        %v988 = vadd.f32 %v932, %v983
        %v989 = vadd.f32 %v952, %v984
        %v990 = vadd.f32 %v972, %v982
        %991 = vst [vmem:[%s298] sm:$0xff] %v988
        %992 = vst [vmem:[%s298 + $0x8] sm:$0xff] %v989
        %vm993 = vcmask 261120
        %994 = vst.msk [vmem:[%s298 + $0x10] sm:$0xff] %vm993, %v990
        %s995 = sand.u32 %s203, 1
        %s996 = scalar_lea.sflag [#allocation3], %s995
        %s997 = sand.u32 %s203, 1
        %s998 = smul.addr %s997, 24
        %s999 = scalar_lea.vmem [#allocation2], %s998
        // Predicated region
        $region53: #{tpu_custom_call.1} parent=51 // pred_check
          %p1000 = pneg %p213
        $region54: #{tpu_custom_call.1} parent=51 // pred_check_branch
          %1002 = sbr.rel (%p1000) target = $region56
        $region55: #{tpu_custom_call.1} parent=51 // pred_region
          %1004 = vsyncadd %s996, 0
          %s1005 = smul.addr %s22, 3
          %s1006 = smul.addr %s1005, 8
          %s1007 = scalar_lea.hbm %s8, %s1006
          %s1009 = sshll.u32 %s999, 4
          %s1010 = int_to_ptr.vmem [resolvable:$true] %s1009
          %s1011 = sshll.u32 %s1007, 4
          %s1012 = int_to_ptr.hbm [resolvable:$true] %s1011
          %1014 = dma.vmem_to_hbm [thread:$0]  %s1010, 384, %s1012, %s996
        $region56: #{tpu_custom_call.1} parent=51 // pred_fallthru
          _
      $region52: #{tpu_custom_call.1} parent=5 // pred_fallthru
        _
      %p1015 = scmp.le.s32.totalorder 2, %s17
      // Predicated region
      $region57: #{tpu_custom_call.1} parent=5 // pred_check
        %p1016 = pneg %p1015
      $region58: #{tpu_custom_call.1} parent=5 // pred_check_branch
        %1018 = sbr.rel (%p1016) target = $region60
      $region59: #{tpu_custom_call.1} parent=5 // pred_region
        %s1019 = ssub.s32 %s17, 2
        // Predicated region
        $region61: #{tpu_custom_call.1} parent=59 // pred_check
          %p1020 = pneg %p219
        $region62: #{tpu_custom_call.1} parent=59 // pred_check_branch
          %1022 = sbr.rel (%p1020) target = $region64
        $region63: #{tpu_custom_call.1} parent=59 // pred_region
          %s1023 = sand.u32 %s204, 1
          %s1024 = scalar_lea.sflag [#allocation3], %s1023
          %s1025 = sand.u32 %s204, 1
          %s1026 = smul.addr %s1025, 24
          %s1027 = scalar_lea.vmem [#allocation2], %s1026
          %1029 = dma.done %s1024, 384
        $region64: #{tpu_custom_call.1} parent=59 // pred_fallthru
          _
      $region60: #{tpu_custom_call.1} parent=5 // pred_fallthru
        _
    $region6: #{tpu_custom_call.1} parent=1 // loop_footer
      %s21 = sadd.s32 1, %s17
    $region7: #{tpu_custom_call.1} parent=1 // loop_footer_branch
      %16 = sbr.rel target = $region3
    $region8: #{tpu_custom_call.1} parent=1 // loop_exit
      _
    %1030 = vsyncpa [#allocation3], 1
    %s1031 = scalar_lea.sflag [#allocation3], 1
    %1032 = vsyncpa %s1031, 1

</llo_original>
